<compile_context>
chip_gen: v7x
topology: tpu7x:2x2x1
jax: 0.10.0
libtpu: 0.0.40
codegen_flags: <defaults>
</compile_context>

<pallas_src>
import jax
import jax.numpy as jnp
from jax.experimental import pallas as pl
from jax.experimental.pallas import tpu as pltpu

# Sublane packing factor per element size (f32 -> 8, bf16 -> 16, int8 -> 32).
_SUBLANE_PACK = {4: 8, 2: 16, 1: 32}
_TARGET_TILE_BYTES = 2 << 20  # ~2 MiB per block (near roofline, small VMEM footprint)


def _copy_kernel(x_ref, o_ref):
    # Pure copy: the BlockSpec index_map already selects the slice-0 data.
    o_ref[...] = x_ref[...]


def _round_down(v, m):
    return (v // m) * m


def combine_slices(x, slice_dim=2):
    """Pallas implementation of CombineSlices (slice_dim fixed to 2, index 0)."""
    assert slice_dim == 2, "kernel implements the module default slice_dim=2"
    B, C, S, H, W = x.shape
    BC, HW = B * C, H * W
    itemsize = jnp.dtype(x.dtype).itemsize
    sub = _SUBLANE_PACK.get(itemsize, 8)

    # Bandwidth-only op: read + write the selected planes exactly once.
    cost = pl.CostEstimate(
        flops=0, transcendentals=0, bytes_accessed=2 * BC * HW * itemsize
    )

    if HW % 128 == 0:
        # Lane-dense path: view x as (B*C, S*H*W); the first H*W columns of each
        # row are exactly the slice-0 plane (row-major layout), so the kernel is
        # a full-lane copy with unmasked stores.
        x_flat = x.reshape(BC, S * HW)
        row_bytes = HW * itemsize

        if row_bytes >= _TARGET_TILE_BYTES:
            # Very large planes: take a few rows and tile the lane axis as well
            # so a single block never exceeds the ~2 MiB target.
            tbc = BC if BC <= sub else sub  # full dim or multiple of sublane pack
            thw = _round_down(_TARGET_TILE_BYTES // (tbc * itemsize), 128)
            thw = max(128, min(HW, thw))
        else:
            tbc = _round_down(_TARGET_TILE_BYTES // row_bytes, sub)
            tbc = max(sub, tbc)
            if tbc >= BC:
                tbc = BC  # full dim is always layout-legal
            thw = HW

        grid = (pl.cdiv(BC, tbc), pl.cdiv(HW, thw))
        out_flat = pl.pallas_call(
            _copy_kernel,
            out_shape=jax.ShapeDtypeStruct((BC, HW), x.dtype),
            grid_spec=pltpu.PrefetchScalarGridSpec(
                num_scalar_prefetch=0,
                grid=grid,
                in_specs=[pl.BlockSpec((tbc, thw), lambda i, j: (i, j))],
                out_specs=pl.BlockSpec((tbc, thw), lambda i, j: (i, j)),
            ),
            compiler_params=pltpu.CompilerParams(
                dimension_semantics=("parallel", "parallel")
            ),
            cost_estimate=cost,
        )(x_flat)
        return out_flat.reshape(B, C, 1, H, W)

    # Fallback for H*W not a multiple of 128: keep the full (H, W) plane as the
    # last two block dims (always layout-legal) and batch several (b, c) planes
    # per grid step to amortize per-step overhead.
    plane_bytes = HW * itemsize
    tbc = max(1, _TARGET_TILE_BYTES // plane_bytes)
    tbc = min(tbc, BC)
    x_flat = x.reshape(BC, S, H, W)
    out_flat = pl.pallas_call(
        _copy_kernel,
        out_shape=jax.ShapeDtypeStruct((BC, 1, H, W), x.dtype),
        grid_spec=pltpu.PrefetchScalarGridSpec(
            num_scalar_prefetch=0,
            grid=(pl.cdiv(BC, tbc),),
            in_specs=[pl.BlockSpec((tbc, 1, H, W), lambda i: (i, 0, 0, 0))],
            out_specs=pl.BlockSpec((tbc, 1, H, W), lambda i: (i, 0, 0, 0)),
        ),
        compiler_params=pltpu.CompilerParams(dimension_semantics=("parallel",)),
        cost_estimate=cost,
    )(x_flat)
    return out_flat.reshape(B, C, 1, H, W)


if __name__ == "__main__":
    key = jax.random.PRNGKey(0)
    # (batch, channels, slices, height, width)
    x = jax.random.normal(key, (2, 4, 8, 16, 16), dtype=jnp.float32)

    out = combine_slices(x, slice_dim=2)
    out = jax.block_until_ready(out)

    # Reference: index_select(dim=2, index=0) keeps the dim with size 1.
    ref = x[:, :, 0:1, :, :]
    assert out.shape == (2, 4, 1, 16, 16), out.shape
    assert jnp.array_equal(out, ref), "mismatch vs reference"

    print("KERNEL_OK")
</pallas_src>

<mosaic_0001>
module attributes {stable_mosaic.version = 11 : i64} {
  func.func @_copy_kernel(%arg0: i32, %arg1: i32, %arg2: memref<8x256xf32, #tpu.memory_space<vmem>>, %arg3: memref<8x256xf32, #tpu.memory_space<vmem>>) attributes {dimension_semantics = [#tpu.dimension_semantics<parallel>, #tpu.dimension_semantics<parallel>], iteration_bounds = array<i64: 1, 1>, scalar_prefetch = 0 : i64, scratch_operands = 0 : i64, tpu.core_type = #tpu.core_type<tc>, window_params = [{transform_indices = @transform_0, window_bounds = array<i64: 8, 256>}, {transform_indices = @transform_1, window_bounds = array<i64: 8, 256>}]} {
    %c0 = arith.constant 0 : index
    %c0_0 = arith.constant 0 : index
    %0 = vector.load %arg2[%c0, %c0_0] : memref<8x256xf32, #tpu.memory_space<vmem>>, vector<8x256xf32>
    %c0_1 = arith.constant 0 : index
    %c0_2 = arith.constant 0 : index
    %1 = vector.load %arg3[%c0_1, %c0_2] : memref<8x256xf32, #tpu.memory_space<vmem>>, vector<8x256xf32>
    tpu.vector_store %arg3[%c0_1, %c0_2], %0 {strides = array<i32>} : memref<8x256xf32, #tpu.memory_space<vmem>>, vector<8x256xf32>,
    return
  }
  func.func @transform_0(%arg0: i32, %arg1: i32) -> (i32, i32) {
    %c0_i32 = arith.constant 0 : i32
    return %arg0, %arg1 : i32, i32
  }
  func.func @transform_1(%arg0: i32, %arg1: i32) -> (i32, i32) {
    %c0_i32 = arith.constant 0 : i32
    return %arg0, %arg1 : i32, i32
  }
}

</mosaic_0001>

<llo_original>
// kernel: tpu_custom_call.1
$region0: #{tpu_custom_call.1}
  #allocation0 [shape = 'u32[]', space=smem, size = 0x4, offset = 0x4, fixed_abs, tag = 'smem constant byte address 0x4 - core index']
  #allocation1 [shape = 'u32[144,128]{1,0:T(1,128)}', space=vmem, size = 0x12000, scoped, tag = 'internal scratch']
  %s0 = inlined_call_operand.hbm [shape: f32[8,2048], index: 0, kind: input, shape index: {}]
  %s1 = inlined_call_operand.hbm [shape: f32[8,256], index: 1, kind: output, shape index: {}]
  %s2 = sld [smem:[#allocation0]]
  $region18: #{tpu_custom_call.1} parent=0
    _
  %s4 = ssub.s32 1, %s2
  %s5 = scalar_select 0, %s4, %s2
  $region1: #{tpu_custom_call.1} parent=0
    #allocation2 [shape = 'u8[8192]{0}', space=vmem, size = 0x2000, scoped, tag = 'input window, operand 0, single buffered']
    #allocation3 [shape = 's32[1]{0}', space=sflag, size = 0x4, scoped, tag = 'scoped memory for tpu_custom_call.1']
    #allocation4 [shape = 's32[1]{0}', space=sflag, size = 0x4, scoped, tag = 'scoped memory for tpu_custom_call.1']
    #allocation5 [shape = 'u8[8192]{0}', space=vmem, size = 0x2000, scoped, tag = 'output window, operand 0, single buffered']
    %6 = vsyncpa [#allocation3], 0
    %7 = vsyncpa [#allocation4], 0
    // Predicated region
    $region2: #{tpu_custom_call.1} parent=1 // pred_check
      _
    $region3: #{tpu_custom_call.1} parent=1 // pred_check_branch
      %9 = sbr.rel (0) target = $region5
    $region4: #{tpu_custom_call.1} parent=1 // pred_region
      %s11 = ssub.s32 256, 256
      %12 = vsyncadd [#allocation3], %s11
      %s14 = sshll.u32 [#allocation2], 4
      %s15 = int_to_ptr.vmem [resolvable:$true] %s14
      %17 = dma.hbm_to_vmem [thread:$0]  %s0, 256, %s15, [#allocation3]
    $region5: #{tpu_custom_call.1} parent=1 // pred_fallthru
      _
    // Predicated region
    $region6: #{tpu_custom_call.1} parent=1 // pred_check
      _
    $region7: #{tpu_custom_call.1} parent=1 // pred_check_branch
      %19 = sbr.rel (0) target = $region9
    $region8: #{tpu_custom_call.1} parent=1 // pred_region
      %20 = dma.done [#allocation3], 256
    $region9: #{tpu_custom_call.1} parent=1 // pred_fallthru
      _
    %v21 = vld [vmem:[#allocation2] sm:$0xff]
    %v22 = vld [vmem:[#allocation2 + $0x8] sm:$0xff]
    %23 = vst [vmem:[#allocation5] sm:$0xff] %v21
    %24 = vst [vmem:[#allocation5 + $0x8] sm:$0xff] %v22
    // Predicated region
    $region10: #{tpu_custom_call.1} parent=1 // pred_check
      _
    $region11: #{tpu_custom_call.1} parent=1 // pred_check_branch
      %26 = sbr.rel (0) target = $region13
    $region12: #{tpu_custom_call.1} parent=1 // pred_region
      %s28 = ssub.s32 256, 256
      %29 = vsyncadd [#allocation4], %s28
      %s31 = sshll.u32 [#allocation5], 4
      %s32 = int_to_ptr.vmem [resolvable:$true] %s31
      %34 = dma.vmem_to_hbm [thread:$0]  %s32, 256, %s1, [#allocation4]
    $region13: #{tpu_custom_call.1} parent=1 // pred_fallthru
      _
    // Predicated region
    $region14: #{tpu_custom_call.1} parent=1 // pred_check
      _
    $region15: #{tpu_custom_call.1} parent=1 // pred_check_branch
      %36 = sbr.rel (0) target = $region17
    $region16: #{tpu_custom_call.1} parent=1 // pred_region
      %37 = dma.done [#allocation4], 256
    $region17: #{tpu_custom_call.1} parent=1 // pred_fallthru
      _
    %38 = vsyncpa [#allocation3], 1
    %39 = vsyncpa [#allocation4], 1

</llo_original>
